<compile_context>
chip_gen: v7x
topology: tpu7x:2x2x1
jax: 0.10.0
libtpu: 0.0.40
codegen_flags: <defaults>
</compile_context>

<pallas_src>
import jax
import jax.numpy as jnp
from jax.experimental import pallas as pl
from jax.experimental.pallas import tpu as pltpu


def _round_up(x, m):
    return ((x + m - 1) // m) * m


def channel_attention_kernel(x_ref, w1_ref, b1_ref, w2_ref, b2_ref, o_ref):
    # x_ref: (TB, C)   w1_ref: (C, H)  b1_ref: (1, H)
    # w2_ref: (H, C)   b2_ref: (1, C)  o_ref: (TB, C)
    x = x_ref[...].astype(jnp.float32)

    # mlp: Linear(C -> H) + ReLU     (f32 compute regardless of I/O dtype)
    h = jnp.dot(x, w1_ref[...].astype(jnp.float32),
                preferred_element_type=jnp.float32) + b1_ref[...].astype(jnp.float32)
    h = jnp.maximum(h, 0.0)

    # mlp: Linear(H -> C)
    att = jnp.dot(h, w2_ref[...].astype(jnp.float32),
                  preferred_element_type=jnp.float32) + b2_ref[...].astype(jnp.float32)

    # sigmoid gate and scale the input
    o_ref[...] = (x * jax.nn.sigmoid(att)).astype(o_ref.dtype)


def channel_attention(x, w1, b1, w2, b2, *, block_b=512):
    """x: (B, C); w1: (C, H); b1: (H,); w2: (H, C); b2: (C,).

    Weights must be pre-transposed from PyTorch nn.Linear's (out, in) layout
    to (in, out) before calling.
    """
    B, C = x.shape
    H = w1.shape[1]

    # ---- row-tile selection ------------------------------------------------
    bb = max(8, _round_up(min(block_b, _round_up(B, 8)), 8))
    # Keep several grid steps so both v7x TensorCores get work, but never shrink
    # below the HBM-efficient ~256-row tile.
    while bb > 256 and pl.cdiv(B, bb) < 4:
        bb //= 2
    bb = max(8, _round_up(bb, 8))

    B_pad = _round_up(B, bb)
    x_in = x if B_pad == B else jnp.pad(x, ((0, B_pad - B), (0, 0)))

    b1_2d = b1.reshape(1, H)
    b2_2d = b2.reshape(1, C)

    # ---- VMEM budget (capped for v7x's 64 MiB physical VMEM) ----------------
    x_item = jnp.dtype(x.dtype).itemsize
    w_item = jnp.dtype(w1.dtype).itemsize
    tile_bytes = bb * C * x_item
    weight_bytes = (C * H + H * C + H + C) * w_item
    # conservative: assume double-buffering everywhere, then 2x headroom + 4 MiB
    est = 4 * tile_bytes + 2 * weight_bytes
    vmem_limit = int(min(64 << 20, max(2 * est + (4 << 20), 16 << 20)))

    grid = (B_pad // bb,)

    def make_call(single_buffer_weights):
        # Resident (constant index_map) operands do not need double buffers.
        wkw = {"pipeline_mode": pl.Buffered(1)} if single_buffer_weights else {}
        return pl.pallas_call(
            channel_attention_kernel,
            out_shape=jax.ShapeDtypeStruct((B_pad, C), x.dtype),
            grid_spec=pltpu.PrefetchScalarGridSpec(
                num_scalar_prefetch=0,
                grid=grid,
                in_specs=[
                    pl.BlockSpec((bb, C), lambda i: (i, 0)),        # x (streamed)
                    pl.BlockSpec((C, H), lambda i: (0, 0), **wkw),  # w1 (resident)
                    pl.BlockSpec((1, H), lambda i: (0, 0), **wkw),  # b1
                    pl.BlockSpec((H, C), lambda i: (0, 0), **wkw),  # w2
                    pl.BlockSpec((1, C), lambda i: (0, 0), **wkw),  # b2
                ],
                out_specs=pl.BlockSpec((bb, C), lambda i: (i, 0)),
            ),
            compiler_params=pltpu.CompilerParams(
                dimension_semantics=("parallel",),
                vmem_limit_bytes=vmem_limit,
            ),
        )

    try:
        out = make_call(single_buffer_weights=True)(x_in, w1, b1_2d, w2, b2_2d)
    except Exception:
        # Fallback for JAX builds that reject pipeline_mode on these specs.
        out = make_call(single_buffer_weights=False)(x_in, w1, b1_2d, w2, b2_2d)

    return out if B_pad == B else out[:B]


def channel_attention_ref(x, w1, b1, w2, b2):
    xf = x.astype(jnp.float32)
    h = jnp.maximum(xf @ w1 + b1, 0.0)
    att = h @ w2 + b2
    return (xf * jax.nn.sigmoid(att)).astype(x.dtype)


if __name__ == "__main__":
    # Small, module-consistent shapes: gate_channels=128, reduction_ratio=16.
    # B deliberately NOT a multiple of 8 to exercise the padded-tail path.
    B = 10
    gate_channels = 128
    reduction_ratio = 16
    H = gate_channels // reduction_ratio  # 8

    key = jax.random.PRNGKey(0)
    kx, kw1, kb1, kw2, kb2 = jax.random.split(key, 5)

    x = jax.random.normal(kx, (B, gate_channels), dtype=jnp.float32)
    # Deterministic synthetic parameters (Linear weights stored as (in, out)).
    w1 = jax.random.normal(kw1, (gate_channels, H), dtype=jnp.float32) * 0.05
    b1 = jax.random.normal(kb1, (H,), dtype=jnp.float32) * 0.05
    w2 = jax.random.normal(kw2, (H, gate_channels), dtype=jnp.float32) * 0.05
    b2 = jax.random.normal(kb2, (gate_channels,), dtype=jnp.float32) * 0.05

    # f32 path (matches PyTorch module numerics).
    out = jax.block_until_ready(channel_attention(x, w1, b1, w2, b2))
    ref = channel_attention_ref(x, w1, b1, w2, b2)
    assert out.shape == x.shape and out.dtype == x.dtype
    assert jnp.allclose(out, ref, atol=1e-5, rtol=1e-5), "f32 mismatch vs reference"

    # bf16 I/O path (halves HBM traffic on this memory-bound op); f32 compute inside.
    x_bf16 = x.astype(jnp.bfloat16)
    out_bf16 = jax.block_until_ready(channel_attention(x_bf16, w1, b1, w2, b2))
    ref_bf16 = channel_attention_ref(x_bf16, w1, b1, w2, b2)
    assert out_bf16.shape == x_bf16.shape and out_bf16.dtype == jnp.bfloat16
    assert jnp.allclose(out_bf16.astype(jnp.float32), ref_bf16.astype(jnp.float32),
                        atol=2e-2, rtol=2e-2), "bf16 mismatch vs reference"

    print("KERNEL_OK")
</pallas_src>

<mosaic_0001>
module attributes {stable_mosaic.version = 11 : i64} {
  func.func @channel_attention_kernel(%arg0: i32, %arg1: memref<16x128xf32, #tpu.memory_space<vmem>>, %arg2: memref<128x8xf32, #tpu.memory_space<vmem>>, %arg3: memref<1x8xf32, #tpu.memory_space<vmem>>, %arg4: memref<8x128xf32, #tpu.memory_space<vmem>>, %arg5: memref<1x128xf32, #tpu.memory_space<vmem>>, %arg6: memref<16x128xf32, #tpu.memory_space<vmem>>) attributes {dimension_semantics = [#tpu.dimension_semantics<parallel>], iteration_bounds = array<i64: 1>, scalar_prefetch = 0 : i64, scratch_operands = 0 : i64, tpu.core_type = #tpu.core_type<tc>, window_params = [{transform_indices = @transform_0, window_bounds = array<i64: 16, 128>}, {pipeline_mode = #tpu.pipeline_mode<synchronous>, transform_indices = @transform_1, window_bounds = array<i64: 128, 8>}, {pipeline_mode = #tpu.pipeline_mode<synchronous>, transform_indices = @transform_2, window_bounds = array<i64: 1, 8>}, {pipeline_mode = #tpu.pipeline_mode<synchronous>, transform_indices = @transform_3, window_bounds = array<i64: 8, 128>}, {pipeline_mode = #tpu.pipeline_mode<synchronous>, transform_indices = @transform_4, window_bounds = array<i64: 1, 128>}, {transform_indices = @transform_5, window_bounds = array<i64: 16, 128>}]} {
    %c0 = arith.constant 0 : index
    %c0_0 = arith.constant 0 : index
    %0 = vector.load %arg1[%c0, %c0_0] : memref<16x128xf32, #tpu.memory_space<vmem>>, vector<16x128xf32>
    %c0_1 = arith.constant 0 : index
    %c0_2 = arith.constant 0 : index
    %1 = vector.load %arg2[%c0_1, %c0_2] : memref<128x8xf32, #tpu.memory_space<vmem>>, vector<128x8xf32>
    %cst = arith.constant dense<0.000000e+00> : vector<16x8xf32>
    %2 = tpu.matmul %0, %1, %cst {dimension_numbers = #tpu.dot_dimension_numbers<[1], [0], [0], [1], [0, 0, 1, 1], [], []>} : vector<16x128xf32>, vector<128x8xf32>, vector<16x8xf32> -> vector<16x8xf32>
    %c0_3 = arith.constant 0 : index
    %c0_4 = arith.constant 0 : index
    %3 = vector.load %arg3[%c0_3, %c0_4] : memref<1x8xf32, #tpu.memory_space<vmem>>, vector<1x8xf32>
    %4 = vector.broadcast %3 : vector<1x8xf32> to vector<16x8xf32>
    %5 = arith.addf %2, %4 : vector<16x8xf32>
    %cst_5 = arith.constant 0.000000e+00 : f32
    %6 = vector.broadcast %cst_5 : f32 to vector<16x8xf32>
    %7 = arith.maximumf %5, %6 : vector<16x8xf32>
    %c0_6 = arith.constant 0 : index
    %c0_7 = arith.constant 0 : index
    %8 = vector.load %arg4[%c0_6, %c0_7] : memref<8x128xf32, #tpu.memory_space<vmem>>, vector<8x128xf32>
    %cst_8 = arith.constant dense<0.000000e+00> : vector<16x128xf32>
    %9 = tpu.matmul %7, %8, %cst_8 {dimension_numbers = #tpu.dot_dimension_numbers<[1], [0], [0], [1], [0, 0, 1, 1], [], []>} : vector<16x8xf32>, vector<8x128xf32>, vector<16x128xf32> -> vector<16x128xf32>
    %c0_9 = arith.constant 0 : index
    %c0_10 = arith.constant 0 : index
    %10 = vector.load %arg5[%c0_9, %c0_10] : memref<1x128xf32, #tpu.memory_space<vmem>>, vector<1x128xf32>
    %11 = vector.broadcast %10 : vector<1x128xf32> to vector<16x128xf32>
    %12 = arith.addf %9, %11 : vector<16x128xf32>
    %13 = arith.negf %12 : vector<16x128xf32>
    %14 = math.exp %13 : vector<16x128xf32>
    %cst_11 = arith.constant 1.000000e+00 : f32
    %15 = vector.broadcast %cst_11 : f32 to vector<16x128xf32>
    %16 = arith.addf %15, %14 : vector<16x128xf32>
    %17 = arith.divf %15, %16 : vector<16x128xf32>
    %18 = arith.mulf %0, %17 : vector<16x128xf32>
    %c0_12 = arith.constant 0 : index
    %c0_13 = arith.constant 0 : index
    %19 = vector.load %arg6[%c0_12, %c0_13] : memref<16x128xf32, #tpu.memory_space<vmem>>, vector<16x128xf32>
    tpu.vector_store %arg6[%c0_12, %c0_13], %18 {strides = array<i32>} : memref<16x128xf32, #tpu.memory_space<vmem>>, vector<16x128xf32>,
    return
  }
  func.func @transform_0(%arg0: i32) -> (i32, i32) {
    %c0_i32 = arith.constant 0 : i32
    %c0_i32_0 = arith.constant 0 : i32
    return %arg0, %c0_i32 : i32, i32
  }
  func.func @transform_1(%arg0: i32) -> (i32, i32) {
    %c0_i32 = arith.constant 0 : i32
    %c0_i32_0 = arith.constant 0 : i32
    %c0_i32_1 = arith.constant 0 : i32
    return %c0_i32, %c0_i32_0 : i32, i32
  }
  func.func @transform_2(%arg0: i32) -> (i32, i32) {
    %c0_i32 = arith.constant 0 : i32
    %c0_i32_0 = arith.constant 0 : i32
    %c0_i32_1 = arith.constant 0 : i32
    return %c0_i32, %c0_i32_0 : i32, i32
  }
  func.func @transform_3(%arg0: i32) -> (i32, i32) {
    %c0_i32 = arith.constant 0 : i32
    %c0_i32_0 = arith.constant 0 : i32
    %c0_i32_1 = arith.constant 0 : i32
    return %c0_i32, %c0_i32_0 : i32, i32
  }
  func.func @transform_4(%arg0: i32) -> (i32, i32) {
    %c0_i32 = arith.constant 0 : i32
    %c0_i32_0 = arith.constant 0 : i32
    %c0_i32_1 = arith.constant 0 : i32
    return %c0_i32, %c0_i32_0 : i32, i32
  }
  func.func @transform_5(%arg0: i32) -> (i32, i32) {
    %c0_i32 = arith.constant 0 : i32
    %c0_i32_0 = arith.constant 0 : i32
    return %arg0, %c0_i32 : i32, i32
  }
}

module attributes {stable_mosaic.version = 11 : i64} {
  func.func @channel_attention_kernel(%arg0: i32, %arg1: memref<16x128xf32, #tpu.memory_space<vmem>>, %arg2: memref<128x8xf32, #tpu.memory_space<vmem>>, %arg3: memref<1x8xf32, #tpu.memory_space<vmem>>, %arg4: memref<8x128xf32, #tpu.memory_space<vmem>>, %arg5: memref<1x128xf32, #tpu.memory_space<vmem>>, %arg6: memref<16x128xf32, #tpu.memory_space<vmem>>) attributes {dimension_semantics = [#tpu.dimension_semantics<parallel>], iteration_bounds = array<i64: 1>, scalar_prefetch = 0 : i64, scratch_operands = 0 : i64, tpu.core_type = #tpu.core_type<tc>, window_params = [{transform_indices = @transform_0, window_bounds = array<i64: 16, 128>}, {pipeline_mode = #tpu.pipeline_mode<synchronous>, transform_indices = @transform_1, window_bounds = array<i64: 128, 8>}, {pipeline_mode = #tpu.pipeline_mode<synchronous>, transform_indices = @transform_2, window_bounds = array<i64: 1, 8>}, {pipeline_mode = #tpu.pipeline_mode<synchronous>, transform_indices = @transform_3, window_bounds = array<i64: 8, 128>}, {pipeline_mode = #tpu.pipeline_mode<synchronous>, transform_indices = @transform_4, window_bounds = array<i64: 1, 128>}, {transform_indices = @transform_5, window_bounds = array<i64: 16, 128>}]} {
    %c0 = arith.constant 0 : index
    %c0_0 = arith.constant 0 : index
    %0 = vector.load %arg1[%c0, %c0_0] : memref<16x128xf32, #tpu.memory_space<vmem>>, vector<16x128xf32>
    %c0_1 = arith.constant 0 : index
    %c0_2 = arith.constant 0 : index
    %1 = vector.load %arg2[%c0_1, %c0_2] : memref<128x8xf32, #tpu.memory_space<vmem>>, vector<128x8xf32>
    %cst = arith.constant dense<0.000000e+00> : vector<16x8xf32>
    %2 = tpu.matmul %0, %1, %cst {dimension_numbers = #tpu.dot_dimension_numbers<[1], [0], [0], [1], [0, 0, 1, 1], [], []>} : vector<16x128xf32>, vector<128x8xf32>, vector<16x8xf32> -> vector<16x8xf32>
    %c0_3 = arith.constant 0 : index
    %c0_4 = arith.constant 0 : index
    %3 = vector.load %arg3[%c0_3, %c0_4] : memref<1x8xf32, #tpu.memory_space<vmem>>, vector<1x8xf32>
    %4 = vector.broadcast %3 : vector<1x8xf32> to vector<16x8xf32>
    %5 = arith.addf %2, %4 : vector<16x8xf32>
    %cst_5 = arith.constant 0.000000e+00 : f32
    %6 = vector.broadcast %cst_5 : f32 to vector<16x8xf32>
    %7 = arith.maximumf %5, %6 : vector<16x8xf32>
    %c0_6 = arith.constant 0 : index
    %c0_7 = arith.constant 0 : index
    %8 = vector.load %arg4[%c0_6, %c0_7] : memref<8x128xf32, #tpu.memory_space<vmem>>, vector<8x128xf32>
    %cst_8 = arith.constant dense<0.000000e+00> : vector<16x128xf32>
    %9 = tpu.matmul %7, %8, %cst_8 {dimension_numbers = #tpu.dot_dimension_numbers<[1], [0], [0], [1], [0, 0, 1, 1], [], []>} : vector<16x8xf32>, vector<8x128xf32>, vector<16x128xf32> -> vector<16x128xf32>
    %c0_9 = arith.constant 0 : index
    %c0_10 = arith.constant 0 : index
    %10 = vector.load %arg5[%c0_9, %c0_10] : memref<1x128xf32, #tpu.memory_space<vmem>>, vector<1x128xf32>
    %11 = vector.broadcast %10 : vector<1x128xf32> to vector<16x128xf32>
    %12 = arith.addf %9, %11 : vector<16x128xf32>
    %13 = arith.negf %12 : vector<16x128xf32>
    %14 = math.exp %13 : vector<16x128xf32>
    %cst_11 = arith.constant 1.000000e+00 : f32
    %15 = vector.broadcast %cst_11 : f32 to vector<16x128xf32>
    %16 = arith.addf %15, %14 : vector<16x128xf32>
    %17 = arith.divf %15, %16 : vector<16x128xf32>
    %18 = arith.mulf %0, %17 : vector<16x128xf32>
    %c0_12 = arith.constant 0 : index
    %c0_13 = arith.constant 0 : index
    %19 = vector.load %arg6[%c0_12, %c0_13] : memref<16x128xf32, #tpu.memory_space<vmem>>, vector<16x128xf32>
    tpu.vector_store %arg6[%c0_12, %c0_13], %18 {strides = array<i32>} : memref<16x128xf32, #tpu.memory_space<vmem>>, vector<16x128xf32>,
    return
  }
  func.func @transform_0(%arg0: i32) -> (i32, i32) {
    %c0_i32 = arith.constant 0 : i32
    %c0_i32_0 = arith.constant 0 : i32
    return %arg0, %c0_i32 : i32, i32
  }
  func.func @transform_1(%arg0: i32) -> (i32, i32) {
    %c0_i32 = arith.constant 0 : i32
    %c0_i32_0 = arith.constant 0 : i32
    %c0_i32_1 = arith.constant 0 : i32
    return %c0_i32, %c0_i32_0 : i32, i32
  }
  func.func @transform_2(%arg0: i32) -> (i32, i32) {
    %c0_i32 = arith.constant 0 : i32
    %c0_i32_0 = arith.constant 0 : i32
    %c0_i32_1 = arith.constant 0 : i32
    return %c0_i32, %c0_i32_0 : i32, i32
  }
  func.func @transform_3(%arg0: i32) -> (i32, i32) {
    %c0_i32 = arith.constant 0 : i32
    %c0_i32_0 = arith.constant 0 : i32
    %c0_i32_1 = arith.constant 0 : i32
    return %c0_i32, %c0_i32_0 : i32, i32
  }
  func.func @transform_4(%arg0: i32) -> (i32, i32) {
    %c0_i32 = arith.constant 0 : i32
    %c0_i32_0 = arith.constant 0 : i32
    %c0_i32_1 = arith.constant 0 : i32
    return %c0_i32, %c0_i32_0 : i32, i32
  }
  func.func @transform_5(%arg0: i32) -> (i32, i32) {
    %c0_i32 = arith.constant 0 : i32
    %c0_i32_0 = arith.constant 0 : i32
    return %arg0, %c0_i32 : i32, i32
  }
}

</mosaic_0001>

<llo_original>
// kernel: tpu_custom_call.1
$region0: #{tpu_custom_call.1}
  #allocation0 [shape = 'u32[]', space=smem, size = 0x4, offset = 0x4, fixed_abs, tag = 'smem constant byte address 0x4 - core index']
  #allocation1 [shape = 'u32[144,128]{1,0:T(1,128)}', space=vmem, size = 0x12000, scoped, tag = 'internal scratch']
  %s0 = inlined_call_operand.vmem [shape: f32[16,128], index: 0, kind: input, shape index: {}]
  %s1 = inlined_call_operand.vmem [shape: f32[128,8], index: 1, kind: input, shape index: {}]
  %s2 = inlined_call_operand.vmem [shape: f32[1,8], index: 2, kind: input, shape index: {}]
  %s3 = inlined_call_operand.vmem [shape: f32[8,128], index: 3, kind: input, shape index: {}]
  %s4 = inlined_call_operand.vmem [shape: f32[1,128], index: 4, kind: input, shape index: {}]
  %s5 = inlined_call_operand.hbm [shape: f32[16,128], index: 5, kind: output, shape index: {}]
  %s6 = sld [smem:[#allocation0]]
  $region30: #{tpu_custom_call.1} parent=0
    _
  %s8 = ssub.s32 1, %s6
  %s9 = scalar_select 0, %s8, %s6
  $region1: #{tpu_custom_call.1} parent=0
    #allocation2 [shape = 'u8[8192]{0}', space=vmem, size = 0x2000, scoped, tag = 'output window, operand 0, single buffered']
    #allocation3 [shape = 's32[1]{0}', space=sflag, size = 0x4, scoped, tag = 'scoped memory for tpu_custom_call.1']
    %10 = vsyncpa [#allocation3], 0
    // Predicated region
    $region2: #{tpu_custom_call.1} parent=1 // pred_check
      _
    $region3: #{tpu_custom_call.1} parent=1 // pred_check_branch
      %12 = sbr.rel (0) target = $region5
    $region4: #{tpu_custom_call.1} parent=1 // pred_region
      _
    $region5: #{tpu_custom_call.1} parent=1 // pred_fallthru
      _
    // Predicated region
    $region6: #{tpu_custom_call.1} parent=1 // pred_check
      _
    $region7: #{tpu_custom_call.1} parent=1 // pred_check_branch
      %14 = sbr.rel (0) target = $region9
    $region8: #{tpu_custom_call.1} parent=1 // pred_region
      _
    $region9: #{tpu_custom_call.1} parent=1 // pred_fallthru
      _
    // Predicated region
    $region10: #{tpu_custom_call.1} parent=1 // pred_check
      _
    $region11: #{tpu_custom_call.1} parent=1 // pred_check_branch
      %16 = sbr.rel (0) target = $region13
    $region12: #{tpu_custom_call.1} parent=1 // pred_region
      _
    $region13: #{tpu_custom_call.1} parent=1 // pred_fallthru
      _
    // Predicated region
    $region14: #{tpu_custom_call.1} parent=1 // pred_check
      _
    $region15: #{tpu_custom_call.1} parent=1 // pred_check_branch
      %18 = sbr.rel (0) target = $region17
    $region16: #{tpu_custom_call.1} parent=1 // pred_region
      _
    $region17: #{tpu_custom_call.1} parent=1 // pred_fallthru
      _
    // Predicated region
    $region18: #{tpu_custom_call.1} parent=1 // pred_check
      _
    $region19: #{tpu_custom_call.1} parent=1 // pred_check_branch
      %20 = sbr.rel (0) target = $region21
    $region20: #{tpu_custom_call.1} parent=1 // pred_region
      _
    $region21: #{tpu_custom_call.1} parent=1 // pred_fallthru
      _
    %v21 = vld [vmem:[%s0] sm:$0xff]
    %v22 = vld [vmem:[%s0 + $0x8] sm:$0xff]
    %v23 = vld [vmem:[%s1] sm:$0xff]
    %v24 = vld [vmem:[%s1 + $0x8] sm:$0xff]
    %v25 = vld [vmem:[%s1 + $0x10] sm:$0xff]
    %v26 = vld [vmem:[%s1 + $0x18] sm:$0xff]
    %v27 = vld [vmem:[%s1 + $0x20] sm:$0xff]
    %v28 = vld [vmem:[%s1 + $0x28] sm:$0xff]
    %v29 = vld [vmem:[%s1 + $0x30] sm:$0xff]
    %v30 = vld [vmem:[%s1 + $0x38] sm:$0xff]
    %v31 = vld [vmem:[%s1 + $0x40] sm:$0xff]
    %v32 = vld [vmem:[%s1 + $0x48] sm:$0xff]
    %v33 = vld [vmem:[%s1 + $0x50] sm:$0xff]
    %v34 = vld [vmem:[%s1 + $0x58] sm:$0xff]
    %v35 = vld [vmem:[%s1 + $0x60] sm:$0xff]
    %v36 = vld [vmem:[%s1 + $0x68] sm:$0xff]
    %v37 = vld [vmem:[%s1 + $0x70] sm:$0xff]
    %v38 = vld [vmem:[%s1 + $0x78] sm:$0xff]
    %v39 = vld [vmem:[%s2] sm:$0x1]
    %v41 = vlaneseq
    %v42 = vshrl.u32 %v41, 7
    %v43 = vsub.s32 0, %v42
    %v44 = vrot.slane %v39, %v43
    %46 = vmatprep.subr.mxu0 0.0
    %47 = vmatpush1.msra.mxu0 %v23
    %48 = vmatprep.subr.mxu0 0.0
    %49 = vmatpush1.msra.mxu0 %v24
    %50 = vmatprep.subr.mxu0 0.0
    %51 = vmatpush1.msra.mxu0 %v25
    %52 = vmatprep.subr.mxu0 0.0
    %53 = vmatpush1.msra.mxu0 %v26
    %54 = vmatprep.subr.mxu0 0.0
    %55 = vmatpush1.msra.mxu0 %v27
    %56 = vmatprep.subr.mxu0 0.0
    %57 = vmatpush1.msra.mxu0 %v28
    %58 = vmatprep.subr.mxu0 0.0
    %59 = vmatpush1.msra.mxu0 %v29
    %60 = vmatprep.subr.mxu0 0.0
    %61 = vmatpush1.msra.mxu0 %v30
    %62 = vmatprep.subr.mxu0 0.0
    %63 = vmatpush1.msra.mxu0 %v31
    %64 = vmatprep.subr.mxu0 0.0
    %65 = vmatpush1.msra.mxu0 %v32
    %66 = vmatprep.subr.mxu0 0.0
    %67 = vmatpush1.msra.mxu0 %v33
    %68 = vmatprep.subr.mxu0 0.0
    %69 = vmatpush1.msra.mxu0 %v34
    %70 = vmatprep.subr.mxu0 0.0
    %71 = vmatpush1.msra.mxu0 %v35
    %72 = vmatprep.subr.mxu0 0.0
    %73 = vmatpush1.msra.mxu0 %v36
    %74 = vmatprep.subr.mxu0 0.0
    %75 = vmatpush1.msra.mxu0 %v37
    %76 = vmatprep.subr.mxu0 0.0
    %77 = vmatpush1.msra.mxu0 %v38
    %78 = vmatprep.subr.mxu0 0.0
    %79 = vmatpush1.msra.mxu0 0.0
    %80 = vmatprep.subr.mxu0 0.0
    %81 = vmatpush1.msra.mxu0 0.0
    %82 = vmatprep.subr.mxu0 0.0
    %83 = vmatpush1.msra.mxu0 0.0
    %84 = vmatprep.subr.mxu0 0.0
    %85 = vmatpush1.msra.mxu0 0.0
    %86 = vmatprep.subr.mxu0 0.0
    %87 = vmatpush1.msra.mxu0 0.0
    %88 = vmatprep.subr.mxu0 0.0
    %89 = vmatpush1.msra.mxu0 0.0
    %90 = vmatprep.subr.mxu0 0.0
    %91 = vmatpush1.msra.mxu0 0.0
    %92 = vmatprep.subr.mxu0 0.0
    %93 = vmatpush1.msra.mxu0 0.0
    %94 = vmatprep.subr.mxu0 0.0
    %95 = vmatpush1.msra.mxu0 0.0
    %96 = vmatprep.subr.mxu0 0.0
    %97 = vmatpush1.msra.mxu0 0.0
    %98 = vmatprep.subr.mxu0 0.0
    %99 = vmatpush1.msra.mxu0 0.0
    %100 = vmatprep.subr.mxu0 0.0
    %101 = vmatpush1.msra.mxu0 0.0
    %102 = vmatprep.subr.mxu0 0.0
    %103 = vmatpush1.msra.mxu0 0.0
    %104 = vmatprep.subr.mxu0 0.0
    %105 = vmatpush1.msra.mxu0 0.0
    %106 = vmatprep.subr.mxu0 0.0
    %107 = vmatpush1.msra.mxu0 0.0
    %108 = vmatprep.subr.mxu0 0.0
    %109 = vmatpush1.msra.mxu0 0.0
    %110 = vmatprep.mubr.f32.mxu0 0.0
    %111 = vmatmul.mubr.f32.gmra.mrb[0].mxu0 %v21
    %v112 = vpop.f32.mrb[0].mxu0
    %v113 = vadd.f32 %v44, %v112
    %v114 = vpop.f32.mrb[0].mxu0
    %115 = vmatprep.mubr.f32.mxu0 0.0
    %116 = vmatmul.mubr.f32.gmra.mrb[0].mxu0 %v22
    %v117 = vpop.f32.mrb[0].mxu0
    %v118 = vadd.f32 %v44, %v117
    %v119 = vpop.f32.mrb[0].mxu0
    %120 = vdwg.mxu0
    %v121 = vmax.f32 %v113, 0.0
    %v122 = vmax.f32 %v118, 0.0
    %v123 = vld [vmem:[%s3] sm:$0xff]
    %v124 = vld [vmem:[%s4] sm:$0x1]
    %v126 = vlaneseq
    %v127 = vshrl.u32 %v126, 7
    %v128 = vsub.s32 0, %v127
    %v129 = vrot.slane %v124, %v128
    %vm131 = vcmask 64512
    %v133 = vsel %vm131, %v121, 0
    %v136 = vsel %vm131, %v122, 0
    %138 = vmatprep.subr.mxu0 0.0
    %139 = vmatpush1.msra.mxu0 %v123
    %140 = vmatprep.subr.mxu0 0.0
    %141 = vmatpush1.msra.mxu0 0.0
    %142 = vmatprep.subr.mxu0 0.0
    %143 = vmatpush1.msra.mxu0 0.0
    %144 = vmatprep.subr.mxu0 0.0
    %145 = vmatpush1.msra.mxu0 0.0
    %146 = vmatprep.subr.mxu0 0.0
    %147 = vmatpush1.msra.mxu0 0.0
    %148 = vmatprep.subr.mxu0 0.0
    %149 = vmatpush1.msra.mxu0 0.0
    %150 = vmatprep.subr.mxu0 0.0
    %151 = vmatpush1.msra.mxu0 0.0
    %152 = vmatprep.subr.mxu0 0.0
    %153 = vmatpush1.msra.mxu0 0.0
    %154 = vmatprep.subr.mxu0 0.0
    %155 = vmatpush1.msra.mxu0 0.0
    %156 = vmatprep.subr.mxu0 0.0
    %157 = vmatpush1.msra.mxu0 0.0
    %158 = vmatprep.subr.mxu0 0.0
    %159 = vmatpush1.msra.mxu0 0.0
    %160 = vmatprep.subr.mxu0 0.0
    %161 = vmatpush1.msra.mxu0 0.0
    %162 = vmatprep.subr.mxu0 0.0
    %163 = vmatpush1.msra.mxu0 0.0
    %164 = vmatprep.subr.mxu0 0.0
    %165 = vmatpush1.msra.mxu0 0.0
    %166 = vmatprep.subr.mxu0 0.0
    %167 = vmatpush1.msra.mxu0 0.0
    %168 = vmatprep.subr.mxu0 0.0
    %169 = vmatpush1.msra.mxu0 0.0
    %170 = vmatprep.subr.mxu0 0.0
    %171 = vmatpush1.msra.mxu0 0.0
    %172 = vmatprep.subr.mxu0 0.0
    %173 = vmatpush1.msra.mxu0 0.0
    %174 = vmatprep.subr.mxu0 0.0
    %175 = vmatpush1.msra.mxu0 0.0
    %176 = vmatprep.subr.mxu0 0.0
    %177 = vmatpush1.msra.mxu0 0.0
    %178 = vmatprep.subr.mxu0 0.0
    %179 = vmatpush1.msra.mxu0 0.0
    %180 = vmatprep.subr.mxu0 0.0
    %181 = vmatpush1.msra.mxu0 0.0
    %182 = vmatprep.subr.mxu0 0.0
    %183 = vmatpush1.msra.mxu0 0.0
    %184 = vmatprep.subr.mxu0 0.0
    %185 = vmatpush1.msra.mxu0 0.0
    %186 = vmatprep.subr.mxu0 0.0
    %187 = vmatpush1.msra.mxu0 0.0
    %188 = vmatprep.subr.mxu0 0.0
    %189 = vmatpush1.msra.mxu0 0.0
    %190 = vmatprep.subr.mxu0 0.0
    %191 = vmatpush1.msra.mxu0 0.0
    %192 = vmatprep.subr.mxu0 0.0
    %193 = vmatpush1.msra.mxu0 0.0
    %194 = vmatprep.subr.mxu0 0.0
    %195 = vmatpush1.msra.mxu0 0.0
    %196 = vmatprep.subr.mxu0 0.0
    %197 = vmatpush1.msra.mxu0 0.0
    %198 = vmatprep.subr.mxu0 0.0
    %199 = vmatpush1.msra.mxu0 0.0
    %200 = vmatprep.subr.mxu0 0.0
    %201 = vmatpush1.msra.mxu0 0.0
    %202 = vmatprep.mubr.f32.mxu0 0.0
    %203 = vmatmul.mubr.f32.gmra.mrb[0].mxu0 %v133
    %v204 = vpop.f32.mrb[0].mxu0
    %v205 = vadd.f32 %v129, %v204
    %v206 = vpop.f32.mrb[0].mxu0
    %207 = vmatprep.mubr.f32.mxu0 0.0
    %208 = vmatmul.mubr.f32.gmra.mrb[0].mxu0 %v136
    %v209 = vpop.f32.mrb[0].mxu0
    %v210 = vadd.f32 %v129, %v209
    %v211 = vpop.f32.mrb[0].mxu0
    %212 = vdwg.mxu0
    %v213 = vxor.u32 %v205, 2147483648
    %v214 = vxor.u32 %v210, 2147483648
    %v215 = vmul.f32 %v213, 1.442695
    %v216 = vpow.pop %v215
    %v217 = vmul.f32 %v214, 1.442695
    %v218 = vpow.pop %v217
    %v219 = vadd.f32 %v216, 1.0
    %v220 = vadd.f32 %v218, 1.0
    %v221 = vrcp.pop %v219
    %v222 = vmul.f32 1.0, %v221
    %v223 = vrcp.pop %v220
    %v224 = vmul.f32 1.0, %v223
    %v225 = vmul.f32 %v21, %v222
    %v226 = vmul.f32 %v22, %v224
    %227 = vst [vmem:[#allocation2] sm:$0xff] %v225
    %228 = vst [vmem:[#allocation2 + $0x8] sm:$0xff] %v226
    // Predicated region
    $region22: #{tpu_custom_call.1} parent=1 // pred_check
      _
    $region23: #{tpu_custom_call.1} parent=1 // pred_check_branch
      %230 = sbr.rel (0) target = $region25
    $region24: #{tpu_custom_call.1} parent=1 // pred_region
      %s232 = ssub.s32 256, 256
      %233 = vsyncadd [#allocation3], %s232
      %s234 = sshll.u32 [#allocation2], 4
      %s235 = int_to_ptr.vmem [resolvable:$true] %s234
      %240 = dma.vmem_to_hbm [thread:$0]  %s235, 256, %s5, [#allocation3], 128, 128, 8
    $region25: #{tpu_custom_call.1} parent=1 // pred_fallthru
      _
    // Predicated region
    $region26: #{tpu_custom_call.1} parent=1 // pred_check
      _
    $region27: #{tpu_custom_call.1} parent=1 // pred_check_branch
      %242 = sbr.rel (0) target = $region29
    $region28: #{tpu_custom_call.1} parent=1 // pred_region
      %243 = dma.done [#allocation3], 256
    $region29: #{tpu_custom_call.1} parent=1 // pred_fallthru
      _
    %244 = vsyncpa [#allocation3], 1

// kernel: tpu_custom_call.1
$region0: #{tpu_custom_call.1}
  #allocation0 [shape = 'u32[]', space=smem, size = 0x4, offset = 0x4, fixed_abs, tag = 'smem constant byte address 0x4 - core index']
  #allocation1 [shape = 'u32[144,128]{1,0:T(1,128)}', space=vmem, size = 0x12000, scoped, tag = 'internal scratch']
  %s0 = inlined_call_operand.vmem [shape: f32[16,128], index: 0, kind: input, shape index: {}]
  %s1 = inlined_call_operand.vmem [shape: f32[128,8], index: 1, kind: input, shape index: {}]
  %s2 = inlined_call_operand.vmem [shape: f32[1,8], index: 2, kind: input, shape index: {}]
  %s3 = inlined_call_operand.vmem [shape: f32[8,128], index: 3, kind: input, shape index: {}]
  %s4 = inlined_call_operand.vmem [shape: f32[1,128], index: 4, kind: input, shape index: {}]
  %s5 = inlined_call_operand.hbm [shape: f32[16,128], index: 5, kind: output, shape index: {}]
  %s6 = sld [smem:[#allocation0]]
  $region30: #{tpu_custom_call.1} parent=0
    _
  %s8 = ssub.s32 1, %s6
  %s9 = scalar_select 0, %s8, %s6
  $region1: #{tpu_custom_call.1} parent=0
    #allocation2 [shape = 'u8[8192]{0}', space=vmem, size = 0x2000, scoped, tag = 'output window, operand 0, single buffered']
    #allocation3 [shape = 's32[1]{0}', space=sflag, size = 0x4, scoped, tag = 'scoped memory for tpu_custom_call.1']
    %10 = vsyncpa [#allocation3], 0
    // Predicated region
    $region2: #{tpu_custom_call.1} parent=1 // pred_check
      _
    $region3: #{tpu_custom_call.1} parent=1 // pred_check_branch
      %12 = sbr.rel (0) target = $region5
    $region4: #{tpu_custom_call.1} parent=1 // pred_region
      _
    $region5: #{tpu_custom_call.1} parent=1 // pred_fallthru
      _
    // Predicated region
    $region6: #{tpu_custom_call.1} parent=1 // pred_check
      _
    $region7: #{tpu_custom_call.1} parent=1 // pred_check_branch
      %14 = sbr.rel (0) target = $region9
    $region8: #{tpu_custom_call.1} parent=1 // pred_region
      _
    $region9: #{tpu_custom_call.1} parent=1 // pred_fallthru
      _
    // Predicated region
    $region10: #{tpu_custom_call.1} parent=1 // pred_check
      _
    $region11: #{tpu_custom_call.1} parent=1 // pred_check_branch
      %16 = sbr.rel (0) target = $region13
    $region12: #{tpu_custom_call.1} parent=1 // pred_region
      _
    $region13: #{tpu_custom_call.1} parent=1 // pred_fallthru
      _
    // Predicated region
    $region14: #{tpu_custom_call.1} parent=1 // pred_check
      _
    $region15: #{tpu_custom_call.1} parent=1 // pred_check_branch
      %18 = sbr.rel (0) target = $region17
    $region16: #{tpu_custom_call.1} parent=1 // pred_region
      _
    $region17: #{tpu_custom_call.1} parent=1 // pred_fallthru
      _
    // Predicated region
    $region18: #{tpu_custom_call.1} parent=1 // pred_check
      _
    $region19: #{tpu_custom_call.1} parent=1 // pred_check_branch
      %20 = sbr.rel (0) target = $region21
    $region20: #{tpu_custom_call.1} parent=1 // pred_region
      _
    $region21: #{tpu_custom_call.1} parent=1 // pred_fallthru
      _
    %v21 = vld [vmem:[%s0] sm:$0xff]
    %v22 = vld [vmem:[%s0 + $0x8] sm:$0xff]
    %v23 = vld [vmem:[%s1] sm:$0xff]
    %v24 = vld [vmem:[%s1 + $0x8] sm:$0xff]
    %v25 = vld [vmem:[%s1 + $0x10] sm:$0xff]
    %v26 = vld [vmem:[%s1 + $0x18] sm:$0xff]
    %v27 = vld [vmem:[%s1 + $0x20] sm:$0xff]
    %v28 = vld [vmem:[%s1 + $0x28] sm:$0xff]
    %v29 = vld [vmem:[%s1 + $0x30] sm:$0xff]
    %v30 = vld [vmem:[%s1 + $0x38] sm:$0xff]
    %v31 = vld [vmem:[%s1 + $0x40] sm:$0xff]
    %v32 = vld [vmem:[%s1 + $0x48] sm:$0xff]
    %v33 = vld [vmem:[%s1 + $0x50] sm:$0xff]
    %v34 = vld [vmem:[%s1 + $0x58] sm:$0xff]
    %v35 = vld [vmem:[%s1 + $0x60] sm:$0xff]
    %v36 = vld [vmem:[%s1 + $0x68] sm:$0xff]
    %v37 = vld [vmem:[%s1 + $0x70] sm:$0xff]
    %v38 = vld [vmem:[%s1 + $0x78] sm:$0xff]
    %v39 = vld [vmem:[%s2] sm:$0x1]
    %v41 = vlaneseq
    %v42 = vshrl.u32 %v41, 7
    %v43 = vsub.s32 0, %v42
    %v44 = vrot.slane %v39, %v43
    %46 = vmatprep.subr.mxu0 0.0
    %47 = vmatpush1.msra.mxu0 %v23
    %48 = vmatprep.subr.mxu0 0.0
    %49 = vmatpush1.msra.mxu0 %v24
    %50 = vmatprep.subr.mxu0 0.0
    %51 = vmatpush1.msra.mxu0 %v25
    %52 = vmatprep.subr.mxu0 0.0
    %53 = vmatpush1.msra.mxu0 %v26
    %54 = vmatprep.subr.mxu0 0.0
    %55 = vmatpush1.msra.mxu0 %v27
    %56 = vmatprep.subr.mxu0 0.0
    %57 = vmatpush1.msra.mxu0 %v28
    %58 = vmatprep.subr.mxu0 0.0
    %59 = vmatpush1.msra.mxu0 %v29
    %60 = vmatprep.subr.mxu0 0.0
    %61 = vmatpush1.msra.mxu0 %v30
    %62 = vmatprep.subr.mxu0 0.0
    %63 = vmatpush1.msra.mxu0 %v31
    %64 = vmatprep.subr.mxu0 0.0
    %65 = vmatpush1.msra.mxu0 %v32
    %66 = vmatprep.subr.mxu0 0.0
    %67 = vmatpush1.msra.mxu0 %v33
    %68 = vmatprep.subr.mxu0 0.0
    %69 = vmatpush1.msra.mxu0 %v34
    %70 = vmatprep.subr.mxu0 0.0
    %71 = vmatpush1.msra.mxu0 %v35
    %72 = vmatprep.subr.mxu0 0.0
    %73 = vmatpush1.msra.mxu0 %v36
    %74 = vmatprep.subr.mxu0 0.0
    %75 = vmatpush1.msra.mxu0 %v37
    %76 = vmatprep.subr.mxu0 0.0
    %77 = vmatpush1.msra.mxu0 %v38
    %78 = vmatprep.subr.mxu0 0.0
    %79 = vmatpush1.msra.mxu0 0.0
    %80 = vmatprep.subr.mxu0 0.0
    %81 = vmatpush1.msra.mxu0 0.0
    %82 = vmatprep.subr.mxu0 0.0
    %83 = vmatpush1.msra.mxu0 0.0
    %84 = vmatprep.subr.mxu0 0.0
    %85 = vmatpush1.msra.mxu0 0.0
    %86 = vmatprep.subr.mxu0 0.0
    %87 = vmatpush1.msra.mxu0 0.0
    %88 = vmatprep.subr.mxu0 0.0
    %89 = vmatpush1.msra.mxu0 0.0
    %90 = vmatprep.subr.mxu0 0.0
    %91 = vmatpush1.msra.mxu0 0.0
    %92 = vmatprep.subr.mxu0 0.0
    %93 = vmatpush1.msra.mxu0 0.0
    %94 = vmatprep.subr.mxu0 0.0
    %95 = vmatpush1.msra.mxu0 0.0
    %96 = vmatprep.subr.mxu0 0.0
    %97 = vmatpush1.msra.mxu0 0.0
    %98 = vmatprep.subr.mxu0 0.0
    %99 = vmatpush1.msra.mxu0 0.0
    %100 = vmatprep.subr.mxu0 0.0
    %101 = vmatpush1.msra.mxu0 0.0
    %102 = vmatprep.subr.mxu0 0.0
    %103 = vmatpush1.msra.mxu0 0.0
    %104 = vmatprep.subr.mxu0 0.0
    %105 = vmatpush1.msra.mxu0 0.0
    %106 = vmatprep.subr.mxu0 0.0
    %107 = vmatpush1.msra.mxu0 0.0
    %108 = vmatprep.subr.mxu0 0.0
    %109 = vmatpush1.msra.mxu0 0.0
    %110 = vmatprep.mubr.f32.mxu0 0.0
    %111 = vmatmul.mubr.f32.gmra.mrb[0].mxu0 %v21
    %v112 = vpop.f32.mrb[0].mxu0
    %v113 = vadd.f32 %v44, %v112
    %v114 = vpop.f32.mrb[0].mxu0
    %115 = vmatprep.mubr.f32.mxu0 0.0
    %116 = vmatmul.mubr.f32.gmra.mrb[0].mxu0 %v22
    %v117 = vpop.f32.mrb[0].mxu0
    %v118 = vadd.f32 %v44, %v117
    %v119 = vpop.f32.mrb[0].mxu0
    %120 = vdwg.mxu0
    %v121 = vmax.f32 %v113, 0.0
    %v122 = vmax.f32 %v118, 0.0
    %v123 = vld [vmem:[%s3] sm:$0xff]
    %v124 = vld [vmem:[%s4] sm:$0x1]
    %v126 = vlaneseq
    %v127 = vshrl.u32 %v126, 7
    %v128 = vsub.s32 0, %v127
    %v129 = vrot.slane %v124, %v128
    %vm131 = vcmask 64512
    %v133 = vsel %vm131, %v121, 0
    %v136 = vsel %vm131, %v122, 0
    %138 = vmatprep.subr.mxu0 0.0
    %139 = vmatpush1.msra.mxu0 %v123
    %140 = vmatprep.subr.mxu0 0.0
    %141 = vmatpush1.msra.mxu0 0.0
    %142 = vmatprep.subr.mxu0 0.0
    %143 = vmatpush1.msra.mxu0 0.0
    %144 = vmatprep.subr.mxu0 0.0
    %145 = vmatpush1.msra.mxu0 0.0
    %146 = vmatprep.subr.mxu0 0.0
    %147 = vmatpush1.msra.mxu0 0.0
    %148 = vmatprep.subr.mxu0 0.0
    %149 = vmatpush1.msra.mxu0 0.0
    %150 = vmatprep.subr.mxu0 0.0
    %151 = vmatpush1.msra.mxu0 0.0
    %152 = vmatprep.subr.mxu0 0.0
    %153 = vmatpush1.msra.mxu0 0.0
    %154 = vmatprep.subr.mxu0 0.0
    %155 = vmatpush1.msra.mxu0 0.0
    %156 = vmatprep.subr.mxu0 0.0
    %157 = vmatpush1.msra.mxu0 0.0
    %158 = vmatprep.subr.mxu0 0.0
    %159 = vmatpush1.msra.mxu0 0.0
    %160 = vmatprep.subr.mxu0 0.0
    %161 = vmatpush1.msra.mxu0 0.0
    %162 = vmatprep.subr.mxu0 0.0
    %163 = vmatpush1.msra.mxu0 0.0
    %164 = vmatprep.subr.mxu0 0.0
    %165 = vmatpush1.msra.mxu0 0.0
    %166 = vmatprep.subr.mxu0 0.0
    %167 = vmatpush1.msra.mxu0 0.0
    %168 = vmatprep.subr.mxu0 0.0
    %169 = vmatpush1.msra.mxu0 0.0
    %170 = vmatprep.subr.mxu0 0.0
    %171 = vmatpush1.msra.mxu0 0.0
    %172 = vmatprep.subr.mxu0 0.0
    %173 = vmatpush1.msra.mxu0 0.0
    %174 = vmatprep.subr.mxu0 0.0
    %175 = vmatpush1.msra.mxu0 0.0
    %176 = vmatprep.subr.mxu0 0.0
    %177 = vmatpush1.msra.mxu0 0.0
    %178 = vmatprep.subr.mxu0 0.0
    %179 = vmatpush1.msra.mxu0 0.0
    %180 = vmatprep.subr.mxu0 0.0
    %181 = vmatpush1.msra.mxu0 0.0
    %182 = vmatprep.subr.mxu0 0.0
    %183 = vmatpush1.msra.mxu0 0.0
    %184 = vmatprep.subr.mxu0 0.0
    %185 = vmatpush1.msra.mxu0 0.0
    %186 = vmatprep.subr.mxu0 0.0
    %187 = vmatpush1.msra.mxu0 0.0
    %188 = vmatprep.subr.mxu0 0.0
    %189 = vmatpush1.msra.mxu0 0.0
    %190 = vmatprep.subr.mxu0 0.0
    %191 = vmatpush1.msra.mxu0 0.0
    %192 = vmatprep.subr.mxu0 0.0
    %193 = vmatpush1.msra.mxu0 0.0
    %194 = vmatprep.subr.mxu0 0.0
    %195 = vmatpush1.msra.mxu0 0.0
    %196 = vmatprep.subr.mxu0 0.0
    %197 = vmatpush1.msra.mxu0 0.0
    %198 = vmatprep.subr.mxu0 0.0
    %199 = vmatpush1.msra.mxu0 0.0
    %200 = vmatprep.subr.mxu0 0.0
    %201 = vmatpush1.msra.mxu0 0.0
    %202 = vmatprep.mubr.f32.mxu0 0.0
    %203 = vmatmul.mubr.f32.gmra.mrb[0].mxu0 %v133
    %v204 = vpop.f32.mrb[0].mxu0
    %v205 = vadd.f32 %v129, %v204
    %v206 = vpop.f32.mrb[0].mxu0
    %207 = vmatprep.mubr.f32.mxu0 0.0
    %208 = vmatmul.mubr.f32.gmra.mrb[0].mxu0 %v136
    %v209 = vpop.f32.mrb[0].mxu0
    %v210 = vadd.f32 %v129, %v209
    %v211 = vpop.f32.mrb[0].mxu0
    %212 = vdwg.mxu0
    %v213 = vxor.u32 %v205, 2147483648
    %v214 = vxor.u32 %v210, 2147483648
    %v215 = vmul.f32 %v213, 1.442695
    %v216 = vpow.pop %v215
    %v217 = vmul.f32 %v214, 1.442695
    %v218 = vpow.pop %v217
    %v219 = vadd.f32 %v216, 1.0
    %v220 = vadd.f32 %v218, 1.0
    %v221 = vrcp.pop %v219
    %v222 = vmul.f32 1.0, %v221
    %v223 = vrcp.pop %v220
    %v224 = vmul.f32 1.0, %v223
    %v225 = vmul.f32 %v21, %v222
    %v226 = vmul.f32 %v22, %v224
    %227 = vst [vmem:[#allocation2] sm:$0xff] %v225
    %228 = vst [vmem:[#allocation2 + $0x8] sm:$0xff] %v226
    // Predicated region
    $region22: #{tpu_custom_call.1} parent=1 // pred_check
      _
    $region23: #{tpu_custom_call.1} parent=1 // pred_check_branch
      %230 = sbr.rel (0) target = $region25
    $region24: #{tpu_custom_call.1} parent=1 // pred_region
      %s232 = ssub.s32 256, 256
      %233 = vsyncadd [#allocation3], %s232
      %s234 = sshll.u32 [#allocation2], 4
      %s235 = int_to_ptr.vmem [resolvable:$true] %s234
      %240 = dma.vmem_to_hbm [thread:$0]  %s235, 256, %s5, [#allocation3], 128, 128, 8
    $region25: #{tpu_custom_call.1} parent=1 // pred_fallthru
      _
    // Predicated region
    $region26: #{tpu_custom_call.1} parent=1 // pred_check
      _
    $region27: #{tpu_custom_call.1} parent=1 // pred_check_branch
      %242 = sbr.rel (0) target = $region29
    $region28: #{tpu_custom_call.1} parent=1 // pred_region
      %243 = dma.done [#allocation3], 256
    $region29: #{tpu_custom_call.1} parent=1 // pred_fallthru
      _
    %244 = vsyncpa [#allocation3], 1

</llo_original>
